<compile_context>
chip_gen: v7x
topology: tpu7x:2x2x1
jax: 0.10.0
libtpu: 0.0.40
codegen_flags: <defaults>
</compile_context>

<pallas_src>
import functools
import math

import jax
import jax.numpy as jnp
from jax.experimental import pallas as pl
from jax.experimental.pallas import tpu as pltpu


_LN_EPS = 1e-5
_PARALLEL_1D = pltpu.CompilerParams(dimension_semantics=("parallel",))


# ----------------------------- in-kernel helpers ------------------------------

def _mxu_dot(a, b):
    """bf16 operands, f32 accumulation (MXU-friendly on v5e/v6e/v7x)."""
    return jnp.dot(a.astype(jnp.bfloat16), b.astype(jnp.bfloat16),
                   preferred_element_type=jnp.float32)


def _layernorm(h, g, b, eps):
    mu = jnp.mean(h, axis=-1, keepdims=True)
    c = h - mu
    var = jnp.mean(c * c, axis=-1, keepdims=True)
    return c * jax.lax.rsqrt(var + eps) * g + b


# ----------------------------- Pallas kernels ------------------------------

def _qkv_self_kernel(x_ref, pos_ref, wqk_ref, bqk_ref, wv_ref, bv_ref,
                     q_ref, k_ref, v_ref):
    # q = (x+pos) @ Wq ; k = (x+pos) @ Wk ; v = x @ Wv     (Wq|Wk packed as (D, 2D))
    x = x_ref[...]
    xp = x + pos_ref[...]
    qk = _mxu_dot(xp, wqk_ref[...]) + bqk_ref[...]
    d = q_ref.shape[-1]
    q_ref[...] = qk[:, :d]
    k_ref[...] = qk[:, d:]
    v_ref[...] = _mxu_dot(x, wv_ref[...]) + bv_ref[...]


def _q_cross_kernel(x_ref, pos_ref, w_ref, b_ref, q_ref):
    # q = (x + pos) @ Wq + bq
    q_ref[...] = _mxu_dot(x_ref[...] + pos_ref[...], w_ref[...]) + b_ref[...]


def _kv_cross_kernel(x_ref, pos_ref, wk_ref, bk_ref, wv_ref, bv_ref,
                     k_ref, v_ref):
    # k = (mem + pos) @ Wk ; v = mem @ Wv
    x = x_ref[...]
    k_ref[...] = _mxu_dot(x + pos_ref[...], wk_ref[...]) + bk_ref[...]
    v_ref[...] = _mxu_dot(x, wv_ref[...]) + bv_ref[...]


def _attn_kernel(q_ref, k_ref, v_ref, o_ref, *, nhead, scale):
    # one grid step = one batch element, all heads (static loop amortizes step overhead)
    q = q_ref[0]                                  # (Lq, D)
    k = k_ref[0]                                  # (Lk, D)
    v = v_ref[0]                                  # (Lk, D)
    dh = q.shape[-1] // nhead
    for h in range(nhead):
        sl = slice(h * dh, (h + 1) * dh)
        qh = (q[:, sl] * scale).astype(jnp.bfloat16)
        kh = k[:, sl].astype(jnp.bfloat16)
        vh = v[:, sl].astype(jnp.bfloat16)
        # contract over Dh for both operands (no in-kernel transpose); Lk on lanes.
        s = jax.lax.dot_general(qh, kh, (((1,), (1,)), ((), ())),
                                preferred_element_type=jnp.float32)   # (Lq, Lk)
        m = jnp.max(s, axis=-1, keepdims=True)
        p = jnp.exp(s - m)
        denom = jnp.sum(p, axis=-1, keepdims=True)
        p = p * pl.reciprocal(denom, approx=True)     # divide on EUP, not VALU
        o_ref[0, :, sl] = jnp.dot(p.astype(jnp.bfloat16), vh,
                                  preferred_element_type=jnp.float32)


def _attnout_ln_kernel(a_ref, res_ref, w_ref, b_ref, g_ref, gb_ref, o_ref, *, eps):
    # o = LayerNorm(res + attn @ Wo + bo)
    proj = _mxu_dot(a_ref[...], w_ref[...]) + b_ref[...]
    o_ref[...] = _layernorm(res_ref[...] + proj, g_ref[...], gb_ref[...], eps)


def _ffn_ln_kernel(x_ref, w1_ref, b1_ref, w2_ref, b2_ref, g_ref, gb_ref, o_ref, *, eps):
    # o = LayerNorm(x + relu(x@W1+b1)@W2+b2)
    x = x_ref[...]
    h = _mxu_dot(x, w1_ref[...]) + b1_ref[...]
    h = jnp.maximum(h, 0.0)
    y = _mxu_dot(h, w2_ref[...]) + b2_ref[...]
    o_ref[...] = _layernorm(x + y, g_ref[...], gb_ref[...], eps)


def _ln_kernel(x_ref, g_ref, b_ref, o_ref, *, eps):
    o_ref[...] = _layernorm(x_ref[...], g_ref[...], b_ref[...], eps)


# ----------------------------- kernel wrappers ------------------------------

def _row_tile(n, cap):
    """Whole N if small; else the largest multiple-of-8 divisor of N <= cap."""
    if n <= cap:
        return n
    for t in range(cap - cap % 8, 7, -8):
        if n % t == 0:
            return t
    return n


def _row_spec(tile, cols):
    return pl.BlockSpec((tile, cols), lambda i: (i, 0))


def _full_spec(rows, cols):
    return pl.BlockSpec((rows, cols), lambda i: (0, 0))


def qkv_self_proj(x, pos, wqk_t, bqk, wv_t, bv):
    n, d = x.shape
    tile = _row_tile(n, 512)
    out = jax.ShapeDtypeStruct((n, d), jnp.float32)
    return pl.pallas_call(
        _qkv_self_kernel,
        out_shape=(out, out, out),
        grid=(n // tile,),
        in_specs=[_row_spec(tile, d), _row_spec(tile, d),
                  _full_spec(d, 2 * d), _full_spec(1, 2 * d),
                  _full_spec(d, d), _full_spec(1, d)],
        out_specs=(_row_spec(tile, d), _row_spec(tile, d), _row_spec(tile, d)),
        compiler_params=_PARALLEL_1D,
    )(x, pos, wqk_t, bqk.reshape(1, -1), wv_t, bv.reshape(1, -1))


def q_cross_proj(x, pos, w_t, b):
    n, d = x.shape
    dout = w_t.shape[1]
    tile = _row_tile(n, 512)
    return pl.pallas_call(
        _q_cross_kernel,
        out_shape=jax.ShapeDtypeStruct((n, dout), jnp.float32),
        grid=(n // tile,),
        in_specs=[_row_spec(tile, d), _row_spec(tile, d),
                  _full_spec(d, dout), _full_spec(1, dout)],
        out_specs=_row_spec(tile, dout),
        compiler_params=_PARALLEL_1D,
    )(x, pos, w_t, b.reshape(1, -1))


def kv_cross_proj(x, pos, wk_t, bk, wv_t, bv):
    n, d = x.shape
    tile = _row_tile(n, 512)
    out = jax.ShapeDtypeStruct((n, d), jnp.float32)
    return pl.pallas_call(
        _kv_cross_kernel,
        out_shape=(out, out),
        grid=(n // tile,),
        in_specs=[_row_spec(tile, d), _row_spec(tile, d),
                  _full_spec(d, d), _full_spec(1, d),
                  _full_spec(d, d), _full_spec(1, d)],
        out_specs=(_row_spec(tile, d), _row_spec(tile, d)),
        compiler_params=_PARALLEL_1D,
    )(x, pos, wk_t, bk.reshape(1, -1), wv_t, bv.reshape(1, -1))


def attention(q, k, v, nhead):
    """q:(B,Lq,D), k/v:(B,Lk,D) -> (B,Lq,D); grid over batch, all heads per step."""
    b, lq, d = q.shape
    lk = k.shape[1]
    scale = 1.0 / math.sqrt(d // nhead)
    kern = functools.partial(_attn_kernel, nhead=nhead, scale=scale)
    return pl.pallas_call(
        kern,
        out_shape=jax.ShapeDtypeStruct((b, lq, d), jnp.float32),
        grid=(b,),
        in_specs=[pl.BlockSpec((1, lq, d), lambda i: (i, 0, 0)),
                  pl.BlockSpec((1, lk, d), lambda i: (i, 0, 0)),
                  pl.BlockSpec((1, lk, d), lambda i: (i, 0, 0))],
        out_specs=pl.BlockSpec((1, lq, d), lambda i: (i, 0, 0)),
        compiler_params=_PARALLEL_1D,
    )(q, k, v)


def attnout_ln(a, res, w_t, b, gamma, beta, eps=_LN_EPS):
    """LayerNorm(res + a @ Wo + bo) — out-proj with fused residual + LN epilogue."""
    n, d = a.shape
    tile = _row_tile(n, 512)
    kern = functools.partial(_attnout_ln_kernel, eps=eps)
    return pl.pallas_call(
        kern,
        out_shape=jax.ShapeDtypeStruct((n, d), jnp.float32),
        grid=(n // tile,),
        in_specs=[_row_spec(tile, d), _row_spec(tile, d),
                  _full_spec(d, d), _full_spec(1, d),
                  _full_spec(1, d), _full_spec(1, d)],
        out_specs=_row_spec(tile, d),
        compiler_params=_PARALLEL_1D,
    )(a, res, w_t, b.reshape(1, -1), gamma.reshape(1, -1), beta.reshape(1, -1))


def ffn_ln(x, w1_t, b1, w2_t, b2, gamma, beta, eps=_LN_EPS):
    """LayerNorm(x + relu(x@W1+b1)@W2+b2), fully fused."""
    n, d = x.shape
    dff = w1_t.shape[1]
    # smaller row cap keeps the (tile, DFF) intermediate VMEM-resident on v7x (64 MiB)
    tile = _row_tile(n, 256)
    kern = functools.partial(_ffn_ln_kernel, eps=eps)
    return pl.pallas_call(
        kern,
        out_shape=jax.ShapeDtypeStruct((n, d), jnp.float32),
        grid=(n // tile,),
        in_specs=[_row_spec(tile, d),
                  _full_spec(d, dff), _full_spec(1, dff),
                  _full_spec(dff, d), _full_spec(1, d),
                  _full_spec(1, d), _full_spec(1, d)],
        out_specs=_row_spec(tile, d),
        compiler_params=_PARALLEL_1D,
    )(x, w1_t, b1.reshape(1, -1), w2_t, b2.reshape(1, -1),
      gamma.reshape(1, -1), beta.reshape(1, -1))


def layernorm(x, gamma, beta, eps=_LN_EPS):
    n, d = x.shape
    tile = _row_tile(n, 512)
    kern = functools.partial(_ln_kernel, eps=eps)
    return pl.pallas_call(
        kern,
        out_shape=jax.ShapeDtypeStruct((n, d), jnp.float32),
        grid=(n // tile,),
        in_specs=[_row_spec(tile, d), _full_spec(1, d), _full_spec(1, d)],
        out_specs=_row_spec(tile, d),
        compiler_params=_PARALLEL_1D,
    )(x, gamma.reshape(1, -1), beta.reshape(1, -1))


# ----------------------------- model pieces ------------------------------

def decoder_layer_forward(tgt, memory, p, nhead, pos, query_pos):
    """Single DETR TransformerDecoderLayer (post-norm, dropout=identity)."""
    b, lq, d = tgt.shape
    lk = memory.shape[1]
    nq, nk = b * lq, b * lk
    # TODO(synk): attn_mask / key_padding_mask are not supported (they are None here).

    tgt2d = tgt.reshape(nq, d)
    qp2d = query_pos.reshape(nq, d)

    # ---- self-attention: fused (Q|K packed + V) projection, pos add folded in ----
    q, k, v = qkv_self_proj(tgt2d, qp2d, p["sa_wqk_t"], p["sa_bqk"],
                            p["sa_wv_t"], p["sa_bv"])
    attn = attention(q.reshape(b, lq, d), k.reshape(b, lq, d), v.reshape(b, lq, d), nhead)
    tgt2d = attnout_ln(attn.reshape(nq, d), tgt2d, p["sa_wo_t"], p["sa_bo"],
                       p["norm1_g"], p["norm1_b"])

    # ---- cross-attention ----
    q = q_cross_proj(tgt2d, qp2d, p["ca_wq_t"], p["ca_bq"])
    kc, vc = kv_cross_proj(memory.reshape(nk, d), pos.reshape(nk, d),
                           p["ca_wk_t"], p["ca_bk"], p["ca_wv_t"], p["ca_bv"])
    attn = attention(q.reshape(b, lq, d), kc.reshape(b, lk, d), vc.reshape(b, lk, d), nhead)
    tgt2d = attnout_ln(attn.reshape(nq, d), tgt2d, p["ca_wo_t"], p["ca_bo"],
                       p["norm2_g"], p["norm2_b"])

    # ---- FFN + residual + LN3 (fully fused) ----
    tgt2d = ffn_ln(tgt2d, p["lin1_w_t"], p["lin1_b"], p["lin2_w_t"], p["lin2_b"],
                   p["norm3_g"], p["norm3_b"])
    return tgt2d.reshape(b, lq, d)


def transformer_decoder(tgt, memory, layer_params, final_norm, nhead,
                        pos=None, query_pos=None, return_intermediate=False):
    b, lq, d = tgt.shape
    if pos is None:
        pos = jnp.zeros_like(memory)
    if query_pos is None:
        query_pos = jnp.zeros_like(tgt)

    def apply_final_norm(x):
        return layernorm(x.reshape(b * lq, d),
                         final_norm["g"], final_norm["b"]).reshape(b, lq, d)

    output = tgt
    intermediate = []
    for p in layer_params:
        output = decoder_layer_forward(output, memory, p, nhead, pos, query_pos)
        if return_intermediate:
            intermediate.append(apply_final_norm(output))

    output = apply_final_norm(output)
    if return_intermediate:
        intermediate[-1] = output
        return jnp.stack(intermediate)   # (num_layers, B, Lq, D)
    return output


# ----------------------------- param init ------------------------------

def init_params(key, num_layers, d_model, dff):
    """Weights stored pre-transposed (Din, Dout), Q|K packed — no .T in forward path."""
    layers = []
    for _ in range(num_layers):
        key, *ks = jax.random.split(key, 13)

        def n(k, shape):
            return jax.random.normal(k, shape, jnp.float32) * 0.02

        # in_proj layout follows nn.MultiheadAttention: rows [Wq; Wk; Wv] of (3D, D)
        sa_in_w, sa_in_b = n(ks[0], (3 * d_model, d_model)), n(ks[1], (3 * d_model,))
        ca_in_w, ca_in_b = n(ks[4], (3 * d_model, d_model)), n(ks[5], (3 * d_model,))
        layers.append(dict(
            sa_wqk_t=jnp.transpose(sa_in_w[:2 * d_model]), sa_bqk=sa_in_b[:2 * d_model],
            sa_wv_t=jnp.transpose(sa_in_w[2 * d_model:]), sa_bv=sa_in_b[2 * d_model:],
            sa_wo_t=jnp.transpose(n(ks[2], (d_model, d_model))), sa_bo=n(ks[3], (d_model,)),
            ca_wq_t=jnp.transpose(ca_in_w[:d_model]), ca_bq=ca_in_b[:d_model],
            ca_wk_t=jnp.transpose(ca_in_w[d_model:2 * d_model]),
            ca_bk=ca_in_b[d_model:2 * d_model],
            ca_wv_t=jnp.transpose(ca_in_w[2 * d_model:]), ca_bv=ca_in_b[2 * d_model:],
            ca_wo_t=jnp.transpose(n(ks[6], (d_model, d_model))), ca_bo=n(ks[7], (d_model,)),
            lin1_w_t=jnp.transpose(n(ks[8], (dff, d_model))), lin1_b=n(ks[9], (dff,)),
            lin2_w_t=jnp.transpose(n(ks[10], (d_model, dff))), lin2_b=n(ks[11], (d_model,)),
            norm1_g=jnp.ones((d_model,), jnp.float32), norm1_b=jnp.zeros((d_model,), jnp.float32),
            norm2_g=jnp.ones((d_model,), jnp.float32), norm2_b=jnp.zeros((d_model,), jnp.float32),
            norm3_g=jnp.ones((d_model,), jnp.float32), norm3_b=jnp.zeros((d_model,), jnp.float32),
        ))
    final = dict(g=jnp.ones((d_model,), jnp.float32), b=jnp.zeros((d_model,), jnp.float32))
    return layers, final


# ----------------------------- main ------------------------------

if __name__ == "__main__":
    B, LQ, LK, D, H, DFF, NUM_LAYERS = 2, 8, 16, 32, 4, 64, 2

    key = jax.random.PRNGKey(0)
    k1, k2, k3, k4, k5 = jax.random.split(key, 5)
    tgt = jax.random.normal(k1, (B, LQ, D), jnp.float32)        # decoder queries
    memory = jax.random.normal(k2, (B, LK, D), jnp.float32)     # encoder memory
    query_pos = jax.random.normal(k3, (B, LQ, D), jnp.float32)
    pos = jax.random.normal(k4, (B, LK, D), jnp.float32)

    layer_params, final_norm = init_params(k5, NUM_LAYERS, D, DFF)

    out = transformer_decoder(tgt, memory, layer_params, final_norm, H,
                              pos=pos, query_pos=query_pos,
                              return_intermediate=False)
    out = jax.block_until_ready(out)
    assert out.shape == (B, LQ, D) and out.dtype == jnp.float32
    assert bool(jnp.all(jnp.isfinite(out)))
    print("KERNEL_OK")
</pallas_src>

<mosaic_0001>
module attributes {stable_mosaic.version = 11 : i64} {
  func.func @_qkv_self_kernel(%arg0: i32, %arg1: memref<16x32xf32, #tpu.memory_space<vmem>>, %arg2: memref<16x32xf32, #tpu.memory_space<vmem>>, %arg3: memref<32x64xf32, #tpu.memory_space<vmem>>, %arg4: memref<1x64xf32, #tpu.memory_space<vmem>>, %arg5: memref<32x32xf32, #tpu.memory_space<vmem>>, %arg6: memref<1x32xf32, #tpu.memory_space<vmem>>, %arg7: memref<16x32xf32, #tpu.memory_space<vmem>>, %arg8: memref<16x32xf32, #tpu.memory_space<vmem>>, %arg9: memref<16x32xf32, #tpu.memory_space<vmem>>) attributes {dimension_semantics = [#tpu.dimension_semantics<parallel>], iteration_bounds = array<i64: 1>, scalar_prefetch = 0 : i64, scratch_operands = 0 : i64, tpu.core_type = #tpu.core_type<tc>, window_params = [{transform_indices = @transform_0, window_bounds = array<i64: 16, 32>}, {transform_indices = @transform_1, window_bounds = array<i64: 16, 32>}, {pipeline_mode = #tpu.pipeline_mode<synchronous>, transform_indices = @transform_2, window_bounds = array<i64: 32, 64>}, {pipeline_mode = #tpu.pipeline_mode<synchronous>, transform_indices = @transform_3, window_bounds = array<i64: 1, 64>}, {pipeline_mode = #tpu.pipeline_mode<synchronous>, transform_indices = @transform_4, window_bounds = array<i64: 32, 32>}, {pipeline_mode = #tpu.pipeline_mode<synchronous>, transform_indices = @transform_5, window_bounds = array<i64: 1, 32>}, {transform_indices = @transform_6, window_bounds = array<i64: 16, 32>}, {transform_indices = @transform_7, window_bounds = array<i64: 16, 32>}, {transform_indices = @transform_8, window_bounds = array<i64: 16, 32>}]} {
    %c0 = arith.constant 0 : index
    %c0_0 = arith.constant 0 : index
    %0 = vector.load %arg1[%c0, %c0_0] : memref<16x32xf32, #tpu.memory_space<vmem>>, vector<16x32xf32>
    %c0_1 = arith.constant 0 : index
    %c0_2 = arith.constant 0 : index
    %1 = vector.load %arg2[%c0_1, %c0_2] : memref<16x32xf32, #tpu.memory_space<vmem>>, vector<16x32xf32>
    %2 = arith.addf %0, %1 : vector<16x32xf32>
    %c0_3 = arith.constant 0 : index
    %c0_4 = arith.constant 0 : index
    %3 = vector.load %arg3[%c0_3, %c0_4] : memref<32x64xf32, #tpu.memory_space<vmem>>, vector<32x64xf32>
    %4 = arith.truncf %2 : vector<16x32xf32> to vector<16x32xbf16>
    %5 = arith.truncf %3 : vector<32x64xf32> to vector<32x64xbf16>
    %cst = arith.constant dense<0.000000e+00> : vector<16x64xf32>
    %6 = tpu.matmul %4, %5, %cst {dimension_numbers = #tpu.dot_dimension_numbers<[1], [0], [0], [1], [0, 0, 1, 1], [], []>} : vector<16x32xbf16>, vector<32x64xbf16>, vector<16x64xf32> -> vector<16x64xf32>
    %c0_5 = arith.constant 0 : index
    %c0_6 = arith.constant 0 : index
    %7 = vector.load %arg4[%c0_5, %c0_6] : memref<1x64xf32, #tpu.memory_space<vmem>>, vector<1x64xf32>
    %8 = vector.broadcast %7 : vector<1x64xf32> to vector<16x64xf32>
    %9 = arith.addf %6, %8 : vector<16x64xf32>
    %10 = vector.extract_strided_slice %9 {offsets = [0, 0], sizes = [16, 32], strides = [1, 1]} : vector<16x64xf32> to vector<16x32xf32>
    %c0_7 = arith.constant 0 : index
    %c0_8 = arith.constant 0 : index
    %11 = vector.load %arg7[%c0_7, %c0_8] : memref<16x32xf32, #tpu.memory_space<vmem>>, vector<16x32xf32>
    tpu.vector_store %arg7[%c0_7, %c0_8], %10 {strides = array<i32>} : memref<16x32xf32, #tpu.memory_space<vmem>>, vector<16x32xf32>,
    %12 = vector.extract_strided_slice %9 {offsets = [0, 32], sizes = [16, 32], strides = [1, 1]} : vector<16x64xf32> to vector<16x32xf32>
    %c0_9 = arith.constant 0 : index
    %c0_10 = arith.constant 0 : index
    %13 = vector.load %arg8[%c0_9, %c0_10] : memref<16x32xf32, #tpu.memory_space<vmem>>, vector<16x32xf32>
    tpu.vector_store %arg8[%c0_9, %c0_10], %12 {strides = array<i32>} : memref<16x32xf32, #tpu.memory_space<vmem>>, vector<16x32xf32>,
    %c0_11 = arith.constant 0 : index
    %c0_12 = arith.constant 0 : index
    %14 = vector.load %arg5[%c0_11, %c0_12] : memref<32x32xf32, #tpu.memory_space<vmem>>, vector<32x32xf32>
    %15 = arith.truncf %0 : vector<16x32xf32> to vector<16x32xbf16>
    %16 = arith.truncf %14 : vector<32x32xf32> to vector<32x32xbf16>
    %cst_13 = arith.constant dense<0.000000e+00> : vector<16x32xf32>
    %17 = tpu.matmul %15, %16, %cst_13 {dimension_numbers = #tpu.dot_dimension_numbers<[1], [0], [0], [1], [0, 0, 1, 1], [], []>} : vector<16x32xbf16>, vector<32x32xbf16>, vector<16x32xf32> -> vector<16x32xf32>
    %c0_14 = arith.constant 0 : index
    %c0_15 = arith.constant 0 : index
    %18 = vector.load %arg6[%c0_14, %c0_15] : memref<1x32xf32, #tpu.memory_space<vmem>>, vector<1x32xf32>
    %19 = vector.broadcast %18 : vector<1x32xf32> to vector<16x32xf32>
    %20 = arith.addf %17, %19 : vector<16x32xf32>
    %c0_16 = arith.constant 0 : index
    %c0_17 = arith.constant 0 : index
    %21 = vector.load %arg9[%c0_16, %c0_17] : memref<16x32xf32, #tpu.memory_space<vmem>>, vector<16x32xf32>
    tpu.vector_store %arg9[%c0_16, %c0_17], %20 {strides = array<i32>} : memref<16x32xf32, #tpu.memory_space<vmem>>, vector<16x32xf32>,
    return
  }
  func.func @transform_0(%arg0: i32) -> (i32, i32) {
    %c0_i32 = arith.constant 0 : i32
    %c0_i32_0 = arith.constant 0 : i32
    return %arg0, %c0_i32 : i32, i32
  }
  func.func @transform_1(%arg0: i32) -> (i32, i32) {
    %c0_i32 = arith.constant 0 : i32
    %c0_i32_0 = arith.constant 0 : i32
    return %arg0, %c0_i32 : i32, i32
  }
  func.func @transform_2(%arg0: i32) -> (i32, i32) {
    %c0_i32 = arith.constant 0 : i32
    %c0_i32_0 = arith.constant 0 : i32
    %c0_i32_1 = arith.constant 0 : i32
    return %c0_i32, %c0_i32_0 : i32, i32
  }
  func.func @transform_3(%arg0: i32) -> (i32, i32) {
    %c0_i32 = arith.constant 0 : i32
    %c0_i32_0 = arith.constant 0 : i32
    %c0_i32_1 = arith.constant 0 : i32
    return %c0_i32, %c0_i32_0 : i32, i32
  }
  func.func @transform_4(%arg0: i32) -> (i32, i32) {
    %c0_i32 = arith.constant 0 : i32
    %c0_i32_0 = arith.constant 0 : i32
    %c0_i32_1 = arith.constant 0 : i32
    return %c0_i32, %c0_i32_0 : i32, i32
  }
  func.func @transform_5(%arg0: i32) -> (i32, i32) {
    %c0_i32 = arith.constant 0 : i32
    %c0_i32_0 = arith.constant 0 : i32
    %c0_i32_1 = arith.constant 0 : i32
    return %c0_i32, %c0_i32_0 : i32, i32
  }
  func.func @transform_6(%arg0: i32) -> (i32, i32) {
    %c0_i32 = arith.constant 0 : i32
    %c0_i32_0 = arith.constant 0 : i32
    return %arg0, %c0_i32 : i32, i32
  }
  func.func @transform_7(%arg0: i32) -> (i32, i32) {
    %c0_i32 = arith.constant 0 : i32
    %c0_i32_0 = arith.constant 0 : i32
    return %arg0, %c0_i32 : i32, i32
  }
  func.func @transform_8(%arg0: i32) -> (i32, i32) {
    %c0_i32 = arith.constant 0 : i32
    %c0_i32_0 = arith.constant 0 : i32
    return %arg0, %c0_i32 : i32, i32
  }
}

</mosaic_0001>

<llo_original>
// kernel: tpu_custom_call.1
$region0: #{tpu_custom_call.1}
  #allocation0 [shape = 'u32[]', space=smem, size = 0x4, offset = 0x4, fixed_abs, tag = 'smem constant byte address 0x4 - core index']
  #allocation1 [shape = 'u32[144,128]{1,0:T(1,128)}', space=vmem, size = 0x12000, scoped, tag = 'internal scratch']
  %s0 = inlined_call_operand.hbm [shape: f32[16,32], index: 0, kind: input, shape index: {}]
  %s1 = inlined_call_operand.hbm [shape: f32[16,32], index: 1, kind: input, shape index: {}]
  %s2 = inlined_call_operand.hbm [shape: f32[32,64], index: 2, kind: input, shape index: {}]
  %s3 = inlined_call_operand.vmem [shape: f32[1,64], index: 3, kind: input, shape index: {}]
  %s4 = inlined_call_operand.hbm [shape: f32[32,32], index: 4, kind: input, shape index: {}]
  %s5 = inlined_call_operand.vmem [shape: f32[1,32], index: 5, kind: input, shape index: {}]
  %s6 = inlined_call_operand.hbm [shape: f32[16,32], index: 6, kind: output, shape index: {0}]
  %s7 = inlined_call_operand.hbm [shape: f32[16,32], index: 7, kind: output, shape index: {1}]
  %s8 = inlined_call_operand.hbm [shape: f32[16,32], index: 8, kind: output, shape index: {2}]
  %9 = xla_tuple %s6, %s7, %s8
  %s10 = sld [smem:[#allocation0]]
  $region66: #{tpu_custom_call.1} parent=0
    _
  %s12 = ssub.s32 1, %s10
  %s13 = scalar_select 0, %s12, %s10
  $region1: #{tpu_custom_call.1} parent=0
    #allocation2 [shape = 'u8[8192]{0}', space=vmem, size = 0x2000, scoped, tag = 'input window, operand 0, single buffered']
    #allocation3 [shape = 's32[1]{0}', space=sflag, size = 0x4, scoped, tag = 'scoped memory for tpu_custom_call.1']
    #allocation4 [shape = 's32[1]{0}', space=sflag, size = 0x4, scoped, tag = 'scoped memory for tpu_custom_call.1']
    #allocation5 [shape = 'u8[8192]{0}', space=vmem, size = 0x2000, scoped, tag = 'input window, operand 1, single buffered']
    #allocation6 [shape = 's32[1]{0}', space=sflag, size = 0x4, scoped, tag = 'scoped memory for tpu_custom_call.1']
    #allocation7 [shape = 'u8[16384]{0}', space=vmem, size = 0x4000, scoped, tag = 'input window, operand 2, single buffered']
    #allocation8 [shape = 'u8[16384]{0}', space=vmem, size = 0x4000, scoped, tag = 'input window, operand 4, single buffered']
    #allocation9 [shape = 's32[1]{0}', space=sflag, size = 0x4, scoped, tag = 'scoped memory for tpu_custom_call.1']
    #allocation10 [shape = 'u8[8192]{0}', space=vmem, size = 0x2000, scoped, tag = 'output window, operand 0, single buffered']
    #allocation11 [shape = 'u8[8192]{0}', space=vmem, size = 0x2000, scoped, tag = 'output window, operand 1, single buffered']
    #allocation12 [shape = 's32[1]{0}', space=sflag, size = 0x4, scoped, tag = 'scoped memory for tpu_custom_call.1']
    #allocation13 [shape = 'u8[8192]{0}', space=vmem, size = 0x2000, scoped, tag = 'output window, operand 2, single buffered']
    %14 = vsyncpa [#allocation3], 0
    %15 = vsyncpa [#allocation6], 0
    %16 = vsyncpa [#allocation9], 0
    %17 = vsyncpa [#allocation4], 0
    %18 = vsyncpa [#allocation12], 0
    // Predicated region
    $region2: #{tpu_custom_call.1} parent=1 // pred_check
      _
    $region3: #{tpu_custom_call.1} parent=1 // pred_check_branch
      %20 = sbr.rel (0) target = $region5
    $region4: #{tpu_custom_call.1} parent=1 // pred_region
      %s22 = ssub.s32 256, 256
      %23 = vsyncadd [#allocation3], %s22
      %s24 = sshll.u32 [#allocation2], 4
      %s25 = int_to_ptr.vmem [resolvable:$true] %s24
      %30 = dma.hbm_to_vmem [thread:$0]  %s0, 256, %s25, [#allocation3], 128, 128, 8
    $region5: #{tpu_custom_call.1} parent=1 // pred_fallthru
      _
    // Predicated region
    $region6: #{tpu_custom_call.1} parent=1 // pred_check
      _
    $region7: #{tpu_custom_call.1} parent=1 // pred_check_branch
      %32 = sbr.rel (0) target = $region9
    $region8: #{tpu_custom_call.1} parent=1 // pred_region
      %s34 = ssub.s32 256, 256
      %35 = vsyncadd [#allocation6], %s34
      %s36 = sshll.u32 [#allocation5], 4
      %s37 = int_to_ptr.vmem [resolvable:$true] %s36
      %42 = dma.hbm_to_vmem [thread:$0]  %s1, 256, %s37, [#allocation6], 128, 128, 8
    $region9: #{tpu_custom_call.1} parent=1 // pred_fallthru
      _
    // Predicated region
    $region10: #{tpu_custom_call.1} parent=1 // pred_check
      _
    $region11: #{tpu_custom_call.1} parent=1 // pred_check_branch
      %44 = sbr.rel (0) target = $region13
    $region12: #{tpu_custom_call.1} parent=1 // pred_region
      %s46 = ssub.s32 512, 512
      %47 = vsyncadd [#allocation6], %s46
      %s48 = sshll.u32 [#allocation7], 4
      %s49 = int_to_ptr.vmem [resolvable:$true] %s48
      %54 = dma.hbm_to_vmem [thread:$0]  %s2, 512, %s49, [#allocation6], 128, 128, 8
    $region13: #{tpu_custom_call.1} parent=1 // pred_fallthru
      _
    // Predicated region
    $region14: #{tpu_custom_call.1} parent=1 // pred_check
      _
    $region15: #{tpu_custom_call.1} parent=1 // pred_check_branch
      %56 = sbr.rel (0) target = $region17
    $region16: #{tpu_custom_call.1} parent=1 // pred_region
      _
    $region17: #{tpu_custom_call.1} parent=1 // pred_fallthru
      _
    // Predicated region
    $region18: #{tpu_custom_call.1} parent=1 // pred_check
      _
    $region19: #{tpu_custom_call.1} parent=1 // pred_check_branch
      %58 = sbr.rel (0) target = $region21
    $region20: #{tpu_custom_call.1} parent=1 // pred_region
      %s60 = ssub.s32 512, 512
      %61 = vsyncadd [#allocation9], %s60
      %s62 = sshll.u32 [#allocation8], 4
      %s63 = int_to_ptr.vmem [resolvable:$true] %s62
      %68 = dma.hbm_to_vmem [thread:$0]  %s4, 512, %s63, [#allocation9], 128, 128, 8
    $region21: #{tpu_custom_call.1} parent=1 // pred_fallthru
      _
    // Predicated region
    $region22: #{tpu_custom_call.1} parent=1 // pred_check
      _
    $region23: #{tpu_custom_call.1} parent=1 // pred_check_branch
      %70 = sbr.rel (0) target = $region25
    $region24: #{tpu_custom_call.1} parent=1 // pred_region
      _
    $region25: #{tpu_custom_call.1} parent=1 // pred_fallthru
      _
    // Predicated region
    $region26: #{tpu_custom_call.1} parent=1 // pred_check
      _
    $region27: #{tpu_custom_call.1} parent=1 // pred_check_branch
      %72 = sbr.rel (0) target = $region29
    $region28: #{tpu_custom_call.1} parent=1 // pred_region
      %73 = dma.done [#allocation3], 256
    $region29: #{tpu_custom_call.1} parent=1 // pred_fallthru
      _
    // Predicated region
    $region30: #{tpu_custom_call.1} parent=1 // pred_check
      _
    $region31: #{tpu_custom_call.1} parent=1 // pred_check_branch
      %75 = sbr.rel (0) target = $region33
    $region32: #{tpu_custom_call.1} parent=1 // pred_region
      %76 = dma.done [#allocation6], 256
    $region33: #{tpu_custom_call.1} parent=1 // pred_fallthru
      _
    // Predicated region
    $region34: #{tpu_custom_call.1} parent=1 // pred_check
      _
    $region35: #{tpu_custom_call.1} parent=1 // pred_check_branch
      %78 = sbr.rel (0) target = $region37
    $region36: #{tpu_custom_call.1} parent=1 // pred_region
      %79 = dma.done [#allocation6], 512
    $region37: #{tpu_custom_call.1} parent=1 // pred_fallthru
      _
    // Predicated region
    $region38: #{tpu_custom_call.1} parent=1 // pred_check
      _
    $region39: #{tpu_custom_call.1} parent=1 // pred_check_branch
      %81 = sbr.rel (0) target = $region41
    $region40: #{tpu_custom_call.1} parent=1 // pred_region
      %82 = dma.done [#allocation9], 512
    $region41: #{tpu_custom_call.1} parent=1 // pred_fallthru
      _
    %v84 = vld [vmem:[#allocation2] sm:$0xff]
    %v85 = vld [vmem:[#allocation2 + $0x8] sm:$0xff]
    %v86 = vld [vmem:[#allocation5] sm:$0xff]
    %v87 = vld [vmem:[#allocation5 + $0x8] sm:$0xff]
    %v88 = vadd.f32 %v84, %v86
    %v89 = vadd.f32 %v85, %v87
    %v90 = vld [vmem:[#allocation7] sm:$0xff]
    %v91 = vld [vmem:[#allocation7 + $0x8] sm:$0xff]
    %v92 = vld [vmem:[#allocation7 + $0x10] sm:$0xff]
    %v93 = vld [vmem:[#allocation7 + $0x18] sm:$0xff]
    %v94 = vpack.c.bf16 %v89, %v88
    %v95 = vpack.c.bf16 %v91, %v90
    %v96 = vpack.c.bf16 %v93, %v92
    %v97 = vld [vmem:[%s3] sm:$0x1]
    %v99 = vlaneseq
    %v100 = vshrl.u32 %v99, 7
    %v101 = vsub.s32 0, %v100
    %v102 = vrot.slane %v97, %v101
    %vm104 = vcmask 261120
    %v106 = vsel %vm104, %v94, 0
    %108 = vmatprep.subr.bf16.mxu0 0
    %109 = vmatpush1.bf16.msra.mxu0 %v95
    %110 = vmatprep.subr.bf16.mxu0 0
    %111 = vmatpush1.bf16.msra.mxu0 %v96
    %112 = vmatprep.subr.bf16.mxu0 0
    %113 = vmatpush1.bf16.msra.mxu0 0
    %114 = vmatprep.subr.bf16.mxu0 0
    %115 = vmatpush1.bf16.msra.mxu0 0
    %116 = vmatprep.subr.bf16.mxu0 0
    %117 = vmatpush1.bf16.msra.mxu0 0
    %118 = vmatprep.subr.bf16.mxu0 0
    %119 = vmatpush1.bf16.msra.mxu0 0
    %120 = vmatprep.subr.bf16.mxu0 0
    %121 = vmatpush1.bf16.msra.mxu0 0
    %122 = vmatprep.subr.bf16.mxu0 0
    %123 = vmatpush1.bf16.msra.mxu0 0
    %124 = vmatprep.subr.bf16.mxu0 0
    %125 = vmatpush1.bf16.msra.mxu0 0
    %126 = vmatprep.subr.bf16.mxu0 0
    %127 = vmatpush1.bf16.msra.mxu0 0
    %128 = vmatprep.subr.bf16.mxu0 0
    %129 = vmatpush1.bf16.msra.mxu0 0
    %130 = vmatprep.subr.bf16.mxu0 0
    %131 = vmatpush1.bf16.msra.mxu0 0
    %132 = vmatprep.subr.bf16.mxu0 0
    %133 = vmatpush1.bf16.msra.mxu0 0
    %134 = vmatprep.subr.bf16.mxu0 0
    %135 = vmatpush1.bf16.msra.mxu0 0
    %136 = vmatprep.subr.bf16.mxu0 0
    %137 = vmatpush1.bf16.msra.mxu0 0
    %138 = vmatprep.subr.bf16.mxu0 0
    %139 = vmatpush1.bf16.msra.mxu0 0
    %140 = vmatprep.mubr.bf16.mxu0 0
    %141 = vmatmul.mubr.bf16.gmra.mrb[0].mxu0 %v106
    %v142 = vpop.f32.mrb[0].mxu0
    %v143 = vadd.f32 %v102, %v142
    %v144 = vpop.f32.mrb[0].mxu0
    %v145 = vpop.f32.mrb[0].mxu0
    %v146 = vadd.f32 %v102, %v145
    %v147 = vpop.f32.mrb[0].mxu0
    %148 = vdwg.mxu0
    %149 = vst.msk [vmem:[#allocation10] sm:$0xff] %vm104, %v143
    %150 = vst.msk [vmem:[#allocation10 + $0x8] sm:$0xff] %vm104, %v146
    %153 = vrot.lane.b32.xlu0 %v143, 96
    %v154 = vpop.permute.xlu0 %153
    %155 = vrot.lane.b32.xlu0 %v146, 96
    %v156 = vpop.permute.xlu0 %155
    %159 = vst.msk [vmem:[#allocation11] sm:$0xff] %vm104, %v154
    %160 = vst.msk [vmem:[#allocation11 + $0x8] sm:$0xff] %vm104, %v156
    %v161 = vld [vmem:[#allocation8] sm:$0xff]
    %v162 = vld [vmem:[#allocation8 + $0x8] sm:$0xff]
    %v163 = vld [vmem:[#allocation8 + $0x10] sm:$0xff]
    %v164 = vld [vmem:[#allocation8 + $0x18] sm:$0xff]
    %v165 = vpack.c.bf16 %v85, %v84
    %v166 = vpack.c.bf16 %v162, %v161
    %v167 = vpack.c.bf16 %v164, %v163
    %v168 = vld [vmem:[%s5] sm:$0x1]
    %v170 = vlaneseq
    %v171 = vshrl.u32 %v170, 7
    %v172 = vsub.s32 0, %v171
    %v173 = vrot.slane %v168, %v172
    %v176 = vsel %vm104, %v165, 0
    %178 = vmatprep.subr.bf16.mxu0 0
    %179 = vmatpush1.bf16.msra.mxu0 %v166
    %180 = vmatprep.subr.bf16.mxu0 0
    %181 = vmatpush1.bf16.msra.mxu0 %v167
    %182 = vmatprep.subr.bf16.mxu0 0
    %183 = vmatpush1.bf16.msra.mxu0 0
    %184 = vmatprep.subr.bf16.mxu0 0
    %185 = vmatpush1.bf16.msra.mxu0 0
    %186 = vmatprep.subr.bf16.mxu0 0
    %187 = vmatpush1.bf16.msra.mxu0 0
    %188 = vmatprep.subr.bf16.mxu0 0
    %189 = vmatpush1.bf16.msra.mxu0 0
    %190 = vmatprep.subr.bf16.mxu0 0
    %191 = vmatpush1.bf16.msra.mxu0 0
    %192 = vmatprep.subr.bf16.mxu0 0
    %193 = vmatpush1.bf16.msra.mxu0 0
    %194 = vmatprep.subr.bf16.mxu0 0
    %195 = vmatpush1.bf16.msra.mxu0 0
    %196 = vmatprep.subr.bf16.mxu0 0
    %197 = vmatpush1.bf16.msra.mxu0 0
    %198 = vmatprep.subr.bf16.mxu0 0
    %199 = vmatpush1.bf16.msra.mxu0 0
    %200 = vmatprep.subr.bf16.mxu0 0
    %201 = vmatpush1.bf16.msra.mxu0 0
    %202 = vmatprep.subr.bf16.mxu0 0
    %203 = vmatpush1.bf16.msra.mxu0 0
    %204 = vmatprep.subr.bf16.mxu0 0
    %205 = vmatpush1.bf16.msra.mxu0 0
    %206 = vmatprep.subr.bf16.mxu0 0
    %207 = vmatpush1.bf16.msra.mxu0 0
    %208 = vmatprep.subr.bf16.mxu0 0
    %209 = vmatpush1.bf16.msra.mxu0 0
    %210 = vmatprep.mubr.bf16.mxu0 0
    %211 = vmatmul.mubr.bf16.gmra.mrb[0].mxu0 %v176
    %v212 = vpop.f32.mrb[0].mxu0
    %v213 = vadd.f32 %v173, %v212
    %v214 = vpop.f32.mrb[0].mxu0
    %v215 = vpop.f32.mrb[0].mxu0
    %v216 = vadd.f32 %v173, %v215
    %v217 = vpop.f32.mrb[0].mxu0
    %218 = vdwg.mxu0
    %219 = vst.msk [vmem:[#allocation13] sm:$0xff] %vm104, %v213
    %220 = vst.msk [vmem:[#allocation13 + $0x8] sm:$0xff] %vm104, %v216
    // Predicated region
    $region42: #{tpu_custom_call.1} parent=1 // pred_check
      _
    $region43: #{tpu_custom_call.1} parent=1 // pred_check_branch
      %222 = sbr.rel (0) target = $region45
    $region44: #{tpu_custom_call.1} parent=1 // pred_region
      %s224 = ssub.s32 256, 256
      %225 = vsyncadd [#allocation4], %s224
      %s226 = sshll.u32 [#allocation10], 4
      %s227 = int_to_ptr.vmem [resolvable:$true] %s226
      %232 = dma.vmem_to_hbm [thread:$0]  %s227, 256, %s6, [#allocation4], 128, 128, 8
    $region45: #{tpu_custom_call.1} parent=1 // pred_fallthru
      _
    // Predicated region
    $region46: #{tpu_custom_call.1} parent=1 // pred_check
      _
    $region47: #{tpu_custom_call.1} parent=1 // pred_check_branch
      %234 = sbr.rel (0) target = $region49
    $region48: #{tpu_custom_call.1} parent=1 // pred_region
      %s236 = ssub.s32 256, 256
      %237 = vsyncadd [#allocation12], %s236
      %s238 = sshll.u32 [#allocation11], 4
      %s239 = int_to_ptr.vmem [resolvable:$true] %s238
      %244 = dma.vmem_to_hbm [thread:$0]  %s239, 256, %s7, [#allocation12], 128, 128, 8
    $region49: #{tpu_custom_call.1} parent=1 // pred_fallthru
      _
    // Predicated region
    $region50: #{tpu_custom_call.1} parent=1 // pred_check
      _
    $region51: #{tpu_custom_call.1} parent=1 // pred_check_branch
      %246 = sbr.rel (0) target = $region53
    $region52: #{tpu_custom_call.1} parent=1 // pred_region
      %s248 = ssub.s32 256, 256
      %249 = vsyncadd [#allocation12], %s248
      %s250 = sshll.u32 [#allocation13], 4
      %s251 = int_to_ptr.vmem [resolvable:$true] %s250
      %256 = dma.vmem_to_hbm [thread:$0]  %s251, 256, %s8, [#allocation12], 128, 128, 8
    $region53: #{tpu_custom_call.1} parent=1 // pred_fallthru
      _
    // Predicated region
    $region54: #{tpu_custom_call.1} parent=1 // pred_check
      _
    $region55: #{tpu_custom_call.1} parent=1 // pred_check_branch
      %258 = sbr.rel (0) target = $region57
    $region56: #{tpu_custom_call.1} parent=1 // pred_region
      %259 = dma.done [#allocation4], 256
    $region57: #{tpu_custom_call.1} parent=1 // pred_fallthru
      _
    // Predicated region
    $region58: #{tpu_custom_call.1} parent=1 // pred_check
      _
    $region59: #{tpu_custom_call.1} parent=1 // pred_check_branch
      %261 = sbr.rel (0) target = $region61
    $region60: #{tpu_custom_call.1} parent=1 // pred_region
      %262 = dma.done [#allocation12], 256
    $region61: #{tpu_custom_call.1} parent=1 // pred_fallthru
      _
    // Predicated region
    $region62: #{tpu_custom_call.1} parent=1 // pred_check
      _
    $region63: #{tpu_custom_call.1} parent=1 // pred_check_branch
      %264 = sbr.rel (0) target = $region65
    $region64: #{tpu_custom_call.1} parent=1 // pred_region
      %265 = dma.done [#allocation12], 256
    $region65: #{tpu_custom_call.1} parent=1 // pred_fallthru
      _
    %266 = vsyncpa [#allocation3], 1
    %267 = vsyncpa [#allocation6], 1
    %268 = vsyncpa [#allocation9], 1
    %269 = vsyncpa [#allocation4], 1
    %270 = vsyncpa [#allocation12], 1

</llo_original>
